<compile_context>
chip_gen: v6e
topology: v6e:2x2x1
jax: 0.10.0
libtpu: 0.0.40
codegen_flags: <defaults>
</compile_context>

<pallas_src>
import numpy as np
import jax
import jax.numpy as jnp
from jax.experimental import pallas as pl
from jax.experimental.pallas import tpu as pltpu


def _round_up(x, m):
    return (int(x) + m - 1) // m * m


# ---------------------------------------------------------------------------
# Sparse edge-tile SpMM kernel
# ---------------------------------------------------------------------------
def _edge_spmm_kernel(row_block_ref, first_ref, hloc_ref, xv_ref, out_ref):
    """One edge tile: out[row_block] += onehot(h_local) @ xv.

    row_block_ref, first_ref : SMEM scalar-prefetch arrays, (num_tiles,) int32
    hloc_ref : (1, te)   int32  local head row of each edge in this tile (dummy -> 0)
    xv_ref   : (te, emb) bf16   value-scaled tail rows, factor chunks concatenated
    out_ref  : (tm, emb) f32    resident accumulator for the current output row block
    """
    k = pl.program_id(0)

    @pl.when(first_ref[k] == 1)
    def _():
        out_ref[...] = jnp.zeros_like(out_ref)

    tm = out_ref.shape[0]
    te = hloc_ref.shape[1]
    row_ids = jax.lax.broadcasted_iota(jnp.int32, (tm, te), 0)
    # One-hot scatter matrix built on the VPU; dummy edges (val == 0) contribute nothing.
    onehot = (row_ids == hloc_ref[...]).astype(xv_ref.dtype)          # (tm, te)
    out_ref[...] += jnp.dot(onehot, xv_ref[...],
                            preferred_element_type=jnp.float32)


def edge_spmm(xv, hloc, row_block, first, *, n_pad, tm, te):
    """xv: (E_pad, emb) bf16, hloc: (1, E_pad) int32, row_block/first: (num_tiles,) int32.

    Returns out: (n_pad, emb) f32 with out[h_e] += xv[e] segment-summed by head row.
    """
    e_pad, emb = xv.shape
    assert e_pad % te == 0 and te % 128 == 0
    assert tm % 16 == 0 and n_pad % tm == 0
    num_tiles = e_pad // te

    grid_spec = pltpu.PrefetchScalarGridSpec(
        num_scalar_prefetch=2,
        grid=(num_tiles,),
        in_specs=[
            pl.BlockSpec((1, te), lambda k, rb, fi: (0, k)),       # h_local tile
            pl.BlockSpec((te, emb), lambda k, rb, fi: (k, 0)),     # xv tile
        ],
        out_specs=pl.BlockSpec((tm, emb), lambda k, rb, fi: (rb[k], 0)),
    )
    return pl.pallas_call(
        _edge_spmm_kernel,
        out_shape=jax.ShapeDtypeStruct((n_pad, emb), jnp.float32),
        grid_spec=grid_spec,
        compiler_params=pltpu.CompilerParams(
            dimension_semantics=("arbitrary",)),   # output block revisited across tiles
    )(row_block, first, hloc, xv)


# ---------------------------------------------------------------------------
# Static (numpy) edge partitioning: group edges by output row block, pad each
# block's edge list to a multiple of `te` (>= te, so every block gets zeroed).
# ---------------------------------------------------------------------------
def _build_edge_tiling(h_np, t_np, n_nodes, tm, te):
    h_np = np.asarray(h_np, np.int64)
    t_np = np.asarray(t_np, np.int64)
    n_pad = _round_up(max(n_nodes, tm), tm)
    n_blocks = n_pad // tm
    blk = h_np // tm
    order = np.argsort(blk, kind="stable")
    counts = np.bincount(blk, minlength=n_blocks).astype(np.int64)
    padded = np.maximum(((counts + te - 1) // te) * te, te)
    e_pad = int(padded.sum())
    starts = np.concatenate([[0], np.cumsum(padded)])[:-1].astype(np.int64)

    gather_idx = np.zeros(e_pad, np.int32)    # original edge id per slot (dummy -> 0)
    valid = np.zeros(e_pad, np.float32)       # 1.0 for real edges, 0.0 for padding
    h_local = np.zeros(e_pad, np.int32)       # h - row_block * tm (dummy -> 0)
    slot_blk = np.repeat(np.arange(n_blocks, dtype=np.int64), padded)

    pos = 0
    for b in range(n_blocks):
        c = int(counts[b])
        idx_b = order[pos:pos + c]
        pos += c
        s = int(starts[b])
        gather_idx[s:s + c] = idx_b
        valid[s:s + c] = 1.0
        h_local[s:s + c] = (h_np[idx_b] - b * tm).astype(np.int32)

    t_pad = t_np[gather_idx].astype(np.int32)
    h_glob = (slot_blk * tm + h_local).astype(np.int32)

    tiles_per_blk = (padded // te).astype(np.int64)
    num_tiles = int(tiles_per_blk.sum())
    row_block = np.repeat(np.arange(n_blocks, dtype=np.int32), tiles_per_blk)
    first = np.zeros(num_tiles, np.int32)
    tile_starts = np.concatenate([[0], np.cumsum(tiles_per_blk)])[:-1]
    first[tile_starts] = 1

    return dict(n_pad=n_pad, e_pad=e_pad, num_tiles=num_tiles,
                gather_idx=gather_idx, valid=valid, h_local=h_local,
                t_pad=t_pad, h_glob=h_glob, row_block=row_block, first=first)


# ---------------------------------------------------------------------------
# DGCF forward (semantics of DGCF._create_star_routing_embed_with_P, plain softmax
# routing — the pick path is inert in the reference because p_train is always False).
# ---------------------------------------------------------------------------
def make_dgcf_forward(h_np, t_np, n_users, n_items, *, n_factors, n_iterations,
                      n_layers, tm=256, te=512, use_pallas=True):
    N = n_users + n_items
    meta = _build_edge_tiling(h_np, t_np, N, tm, te)
    n_pad = meta["n_pad"]
    E = int(np.asarray(h_np).shape[0])
    eps = 1e-12

    h_idx = jnp.asarray(h_np, jnp.int32)
    t_idx = jnp.asarray(t_np, jnp.int32)
    gather_idx = jnp.asarray(meta["gather_idx"], jnp.int32)      # (E_pad,)
    valid = jnp.asarray(meta["valid"], jnp.float32)              # (E_pad,)
    t_pad = jnp.asarray(meta["t_pad"], jnp.int32)                # (E_pad,)
    hloc = jnp.asarray(meta["h_local"], jnp.int32).reshape(1, -1)  # (1, E_pad)
    row_block = jnp.asarray(meta["row_block"], jnp.int32)        # (num_tiles,)
    first = jnp.asarray(meta["first"], jnp.int32)                # (num_tiles,)
    h_glob = jnp.asarray(meta["h_glob"], jnp.int32)              # (E_pad,) for the ref path

    def prop(xv):
        if use_pallas:
            return edge_spmm(xv, hloc, row_block, first, n_pad=n_pad, tm=tm, te=te)
        # pure-JAX reference: same bf16 edge products, f32 segment-sum accumulation
        return jnp.zeros((n_pad, xv.shape[1]), jnp.float32).at[h_glob].add(
            xv.astype(jnp.float32))

    @jax.jit
    def forward(user_emb, item_emb):
        emb_dim = user_emb.shape[1]
        assert emb_dim % n_factors == 0
        d = emb_dim // n_factors

        ego = jnp.concatenate([user_emb, item_emb], axis=0)          # (N, emb_dim)
        all_embeddings = [ego]
        A_values = jnp.ones((n_factors, E), jnp.float32)             # persists across layers

        for _k in range(n_layers):
            # torch.split(ego, d, dim=1) -> (F, N, d)
            X_factors = ego.reshape(N, n_factors, d).transpose(1, 0, 2)

            # Iteration-invariant tail gathers, hoisted out of the routing loop.
            x_norm = jnp.sqrt(jnp.sum(X_factors * X_factors, axis=2, keepdims=True))
            x_n = X_factors / jnp.maximum(x_norm, eps)
            tanh_tail = jnp.tanh(x_n)[:, t_idx, :]                   # (F, E, d)
            Xt_pad = X_factors[:, t_pad, :]                          # (F, E_pad, d)

            layer_out = None
            for t in range(n_iterations):
                scores = jax.nn.softmax(A_values, axis=0)            # (F, E)

                # D_col = 1/sqrt(rowsum(A_f)); guard isolated rows (rsqrt(0) -> inf).
                rowsum = jnp.zeros((n_factors, N), jnp.float32).at[:, h_idx].add(scores)
                d_vec = jnp.where(rowsum > 0, jax.lax.rsqrt(rowsum), 0.0)  # (F, N)

                # Fold the symmetric normalization into per-edge values: D_col A D_col.
                edge_vals = d_vec[:, h_idx] * scores * d_vec[:, t_idx]     # (F, E)
                ev_pad = edge_vals[:, gather_idx] * valid                  # (F, E_pad)

                # Value-scaled tail rows, factor chunks concatenated along features.
                xv = (ev_pad[:, :, None] * Xt_pad).transpose(1, 0, 2)      # (E_pad, F, d)
                xv = xv.reshape(-1, emb_dim).astype(jnp.bfloat16)          # (E_pad, emb)

                out_cat = prop(xv)[:N]                                     # (N, emb) f32
                out = out_cat.reshape(N, n_factors, d).transpose(1, 0, 2)  # (F, N, d)

                if t == n_iterations - 1:
                    layer_out = out_cat

                # A_values += sum(normalize(out[h]) * tanh(normalize(X[t])), dim=1)
                out_n = out / jnp.maximum(
                    jnp.sqrt(jnp.sum(out * out, axis=2, keepdims=True)), eps)
                A_values = A_values + jnp.sum(out_n[:, h_idx, :] * tanh_tail, axis=2)

            ego = layer_out                     # already the factor-concatenated layout
            all_embeddings.append(ego)

        all_emb = jnp.mean(jnp.stack(all_embeddings, axis=1), axis=1)
        return all_emb[:n_users], all_emb[n_users:]

    return forward


if __name__ == "__main__":
    # small, module-consistent shapes
    n_users, n_items = 12, 20
    emb_dim, n_factors, n_iterations, n_layers = 32, 4, 2, 2
    N = n_users + n_items

    # deterministic xavier_uniform-style init (in-script, no checkpoint)
    key = jax.random.PRNGKey(0)
    ku, ki = jax.random.split(key)
    bu = float(np.sqrt(6.0 / (n_users + emb_dim)))
    bi = float(np.sqrt(6.0 / (n_items + emb_dim)))
    user_emb = jax.random.uniform(ku, (n_users, emb_dim), jnp.float32, -bu, bu)
    item_emb = jax.random.uniform(ki, (n_items, emb_dim), jnp.float32, -bi, bi)

    # deterministic symmetric bipartite adjacency (COO) -> h_list / t_list
    R = np.zeros((n_users, n_items), np.float32)
    for u in range(n_users):
        for i in range(n_items):
            if (u * 3 + i * 5) % 7 < 2 or i == u % n_items or u == i % n_users:
                R[u, i] = 1.0
    adj = np.zeros((N, N), np.float32)
    adj[:n_users, n_users:] = R
    adj[n_users:, :n_users] = R.T
    h_np, t_np = np.nonzero(adj)

    fwd = make_dgcf_forward(h_np, t_np, n_users, n_items,
                            n_factors=n_factors, n_iterations=n_iterations,
                            n_layers=n_layers, use_pallas=True)
    u_g, i_g = fwd(user_emb, item_emb)
    jax.block_until_ready((u_g, i_g))

    # self-consistency check against a pure-JAX segment-sum reference that uses the
    # exact same bf16 edge products (only the summation order differs)
    fwd_ref = make_dgcf_forward(h_np, t_np, n_users, n_items,
                                n_factors=n_factors, n_iterations=n_iterations,
                                n_layers=n_layers, use_pallas=False)
    u_r, i_r = fwd_ref(user_emb, item_emb)
    np.testing.assert_allclose(np.asarray(u_g), np.asarray(u_r), rtol=2e-3, atol=2e-3)
    np.testing.assert_allclose(np.asarray(i_g), np.asarray(i_r), rtol=2e-3, atol=2e-3)

    assert u_g.shape == (n_users, emb_dim) and i_g.shape == (n_items, emb_dim)
    print("KERNEL_OK")
</pallas_src>

<mosaic_0001>
module attributes {stable_mosaic.version = 11 : i64} {
  func.func @_edge_spmm_kernel(%arg0: i32, %arg1: memref<1xi32, #tpu.memory_space<smem>>, %arg2: memref<1xi32, #tpu.memory_space<smem>>, %arg3: memref<1x512xi32, #tpu.memory_space<vmem>>, %arg4: memref<512x32xbf16, #tpu.memory_space<vmem>>, %arg5: memref<256x32xf32, #tpu.memory_space<vmem>>) attributes {dimension_semantics = [#tpu.dimension_semantics<arbitrary>], iteration_bounds = array<i64: 1>, scalar_prefetch = 2 : i64, scratch_operands = 0 : i64, tpu.core_type = #tpu.core_type<tc>, window_params = [{transform_indices = @transform_0, window_bounds = array<i64: 1, 512>}, {transform_indices = @transform_1, window_bounds = array<i64: 512, 32>}, {transform_indices = @transform_2, window_bounds = array<i64: 256, 32>}]} {
    %0 = arith.index_cast %arg0 : i32 to index
    %1 = memref.load %arg2[%0] : memref<1xi32, #tpu.memory_space<smem>>
    %c1_i32 = arith.constant 1 : i32
    %2 = arith.cmpi eq, %1, %c1_i32 : i32
    %3 = arith.extui %2 : i1 to i32
    %c0_i32 = arith.constant 0 : i32
    %4 = arith.cmpi ne, %3, %c0_i32 : i32
    scf.if %4 {
      %cst_7 = arith.constant 0.000000e+00 : f32
      %17 = vector.broadcast %cst_7 : f32 to vector<256x32xf32>
      %c0_8 = arith.constant 0 : index
      %c0_9 = arith.constant 0 : index
      %18 = vector.load %arg5[%c0_8, %c0_9] : memref<256x32xf32, #tpu.memory_space<vmem>>, vector<256x32xf32>
      tpu.vector_store %arg5[%c0_8, %c0_9], %17 {strides = array<i32>} : memref<256x32xf32, #tpu.memory_space<vmem>>, vector<256x32xf32>,
    } else {
    }
    %5 = tpu.iota {dimensions = array<i32: 0>} : vector<256x512xi32>
    %c0 = arith.constant 0 : index
    %c0_0 = arith.constant 0 : index
    %6 = vector.load %arg3[%c0, %c0_0] : memref<1x512xi32, #tpu.memory_space<vmem>>, vector<1x512xi32>
    %7 = vector.broadcast %6 : vector<1x512xi32> to vector<256x512xi32>
    %8 = arith.cmpi eq, %5, %7 : vector<256x512xi32>
    %9 = arith.extui %8 : vector<256x512xi1> to vector<256x512xi32>
    %10 = arith.sitofp %9 : vector<256x512xi32> to vector<256x512xf32>
    %11 = arith.truncf %10 : vector<256x512xf32> to vector<256x512xbf16>
    %c0_1 = arith.constant 0 : index
    %c0_2 = arith.constant 0 : index
    %12 = vector.load %arg5[%c0_1, %c0_2] : memref<256x32xf32, #tpu.memory_space<vmem>>, vector<256x32xf32>
    %c0_3 = arith.constant 0 : index
    %c0_4 = arith.constant 0 : index
    %13 = vector.load %arg4[%c0_3, %c0_4] : memref<512x32xbf16, #tpu.memory_space<vmem>>, vector<512x32xbf16>
    %cst = arith.constant dense<0.000000e+00> : vector<256x32xf32>
    %14 = tpu.matmul %11, %13, %cst {dimension_numbers = #tpu.dot_dimension_numbers<[1], [0], [0], [1], [0, 0, 1, 1], [], []>} : vector<256x512xbf16>, vector<512x32xbf16>, vector<256x32xf32> -> vector<256x32xf32>
    %15 = arith.addf %12, %14 : vector<256x32xf32>
    %c0_5 = arith.constant 0 : index
    %c0_6 = arith.constant 0 : index
    %16 = vector.load %arg5[%c0_5, %c0_6] : memref<256x32xf32, #tpu.memory_space<vmem>>, vector<256x32xf32>
    tpu.vector_store %arg5[%c0_5, %c0_6], %15 {strides = array<i32>} : memref<256x32xf32, #tpu.memory_space<vmem>>, vector<256x32xf32>,
    return
  }
  func.func @transform_0(%arg0: i32, %arg1: memref<1xi32, #tpu.memory_space<smem>>, %arg2: memref<1xi32, #tpu.memory_space<smem>>) -> (i32, i32) {
    %c0_i32 = arith.constant 0 : i32
    %c0_i32_0 = arith.constant 0 : i32
    return %c0_i32, %arg0 : i32, i32
  }
  func.func @transform_1(%arg0: i32, %arg1: memref<1xi32, #tpu.memory_space<smem>>, %arg2: memref<1xi32, #tpu.memory_space<smem>>) -> (i32, i32) {
    %c0_i32 = arith.constant 0 : i32
    %c0_i32_0 = arith.constant 0 : i32
    return %arg0, %c0_i32 : i32, i32
  }
  func.func @transform_2(%arg0: i32, %arg1: memref<1xi32, #tpu.memory_space<smem>>, %arg2: memref<1xi32, #tpu.memory_space<smem>>) -> (i32, i32) {
    %0 = arith.index_cast %arg0 : i32 to index
    %1 = memref.load %arg1[%0] : memref<1xi32, #tpu.memory_space<smem>>
    %c0_i32 = arith.constant 0 : i32
    %c0_i32_0 = arith.constant 0 : i32
    return %1, %c0_i32 : i32, i32
  }
}

</mosaic_0001>

<llo_original>
// kernel: forward.4
$region0: #{forward.4}
  #allocation0 [shape = 'u32[]', space=smem, size = 0x4, offset = 0x4, fixed_abs, tag = 'smem constant byte address 0x4 - core index']
  #allocation1 [shape = 'u32[144,128]{1,0:T(1,128)}', space=vmem, size = 0x12000, scoped, tag = 'internal scratch']
  #allocation2 [shape = 's32[1]{0}', space=sflag, size = 0x4, scoped, tag = 'scoped memory for forward.4']
  #allocation3 [shape = 's32[1]{0:T(128)S(6)}', space=smem, size = 0x200, scoped, tag = 'prefetched SMEM operand 0']
  #allocation4 [shape = 's32[1]{0:T(128)S(6)}', space=smem, size = 0x200, scoped, tag = 'prefetched SMEM operand 1']
  %s0 = inlined_call_operand.<no memory space> [shape: s32[1], index: 0, kind: input, shape index: {}]
  %s1 = inlined_call_operand.<no memory space> [shape: s32[1], index: 1, kind: input, shape index: {}]
  %s2 = inlined_call_operand.vmem [shape: s32[1,512], index: 2, kind: input, shape index: {}]
  %s3 = inlined_call_operand.vmem [shape: bf16[512,32], index: 3, kind: input, shape index: {}]
  %s4 = inlined_call_operand.vmem [shape: f32[256,32], index: 4, kind: output, shape index: {}]
  %s5 = sld [smem:[#allocation0]]
  $region22: #{forward.4} parent=0
    _
  %s7 = ssub.s32 1, %s5
  %s8 = scalar_select 0, %s7, %s5
  %9 = sst [smem:[#allocation3]] %s0
  %10 = sst [smem:[#allocation4]] %s1
  // Predicated region
  $region2: #{forward.4} parent=0 // pred_check
    _
  $region3: #{forward.4} parent=0 // pred_check_branch
    %12 = sbr.rel (0) target = $region5
  $region4: #{forward.4} parent=0 // pred_region
    _
  $region5: #{forward.4} parent=0 // pred_fallthru
    _
  // Predicated region
  $region6: #{forward.4} parent=0 // pred_check
    _
  $region7: #{forward.4} parent=0 // pred_check_branch
    %14 = sbr.rel (0) target = $region9
  $region8: #{forward.4} parent=0 // pred_region
    _
  $region9: #{forward.4} parent=0 // pred_fallthru
    _
  %s15 = sld [smem:[#allocation3]]
  %s16 = smul.u32 32, %s15
  %p17 = scmp.lt.s32.totalorder %s16, 31
  %s18 = scalar_select %p17, %s16, 31
  %s19 = smul.addr %s18, 8
  %s20 = scalar_lea.vmem %s4, %s19
  %s21 = sld [smem:[#allocation3]]
  %s22 = smul.u32 32, %s21
  %p23 = scmp.lt.s32.totalorder %s22, 31
  %s24 = scalar_select %p23, %s22, 31
  %s25 = smul.addr %s24, 8
  %s26 = scalar_lea.vmem %s4, %s25
  %s27 = sld [smem:[#allocation3]]
  %s28 = smul.u32 32, %s27
  %s30 = sld [smem:[#allocation4]]
  %p31 = scmp.eq.s32.totalorder %s30, 1
  // Predicated region
  $region10: #{forward.4} parent=0 // pred_check
    %p32 = pneg %p31
  $region11: #{forward.4} parent=0 // pred_check_branch
    %34 = sbr.rel (%p32) target = $region13
  $region12: #{forward.4} parent=0 // pred_region
    %vm35 = vcmask 261120
    %36 = vst.msk [vmem:[%s26] sm:$0xff] %vm35, 0.0
    %37 = vst.msk [vmem:[%s26 + $0x8] sm:$0xff] %vm35, 0.0
    %38 = vst.msk [vmem:[%s26 + $0x10] sm:$0xff] %vm35, 0.0
    %39 = vst.msk [vmem:[%s26 + $0x18] sm:$0xff] %vm35, 0.0
    %40 = vst.msk [vmem:[%s26 + $0x20] sm:$0xff] %vm35, 0.0
    %41 = vst.msk [vmem:[%s26 + $0x28] sm:$0xff] %vm35, 0.0
    %42 = vst.msk [vmem:[%s26 + $0x30] sm:$0xff] %vm35, 0.0
    %43 = vst.msk [vmem:[%s26 + $0x38] sm:$0xff] %vm35, 0.0
    %44 = vst.msk [vmem:[%s26 + $0x40] sm:$0xff] %vm35, 0.0
    %45 = vst.msk [vmem:[%s26 + $0x48] sm:$0xff] %vm35, 0.0
    %46 = vst.msk [vmem:[%s26 + $0x50] sm:$0xff] %vm35, 0.0
    %47 = vst.msk [vmem:[%s26 + $0x58] sm:$0xff] %vm35, 0.0
    %48 = vst.msk [vmem:[%s26 + $0x60] sm:$0xff] %vm35, 0.0
    %49 = vst.msk [vmem:[%s26 + $0x68] sm:$0xff] %vm35, 0.0
    %50 = vst.msk [vmem:[%s26 + $0x70] sm:$0xff] %vm35, 0.0
    %51 = vst.msk [vmem:[%s26 + $0x78] sm:$0xff] %vm35, 0.0
    %52 = vst.msk [vmem:[%s26 + $0x80] sm:$0xff] %vm35, 0.0
    %53 = vst.msk [vmem:[%s26 + $0x88] sm:$0xff] %vm35, 0.0
    %54 = vst.msk [vmem:[%s26 + $0x90] sm:$0xff] %vm35, 0.0
    %55 = vst.msk [vmem:[%s26 + $0x98] sm:$0xff] %vm35, 0.0
    %56 = vst.msk [vmem:[%s26 + $0xa0] sm:$0xff] %vm35, 0.0
    %57 = vst.msk [vmem:[%s26 + $0xa8] sm:$0xff] %vm35, 0.0
    %58 = vst.msk [vmem:[%s26 + $0xb0] sm:$0xff] %vm35, 0.0
    %59 = vst.msk [vmem:[%s26 + $0xb8] sm:$0xff] %vm35, 0.0
    %60 = vst.msk [vmem:[%s26 + $0xc0] sm:$0xff] %vm35, 0.0
    %61 = vst.msk [vmem:[%s26 + $0xc8] sm:$0xff] %vm35, 0.0
    %62 = vst.msk [vmem:[%s26 + $0xd0] sm:$0xff] %vm35, 0.0
    %63 = vst.msk [vmem:[%s26 + $0xd8] sm:$0xff] %vm35, 0.0
    %64 = vst.msk [vmem:[%s26 + $0xe0] sm:$0xff] %vm35, 0.0
    %65 = vst.msk [vmem:[%s26 + $0xe8] sm:$0xff] %vm35, 0.0
    %66 = vst.msk [vmem:[%s26 + $0xf0] sm:$0xff] %vm35, 0.0
    %67 = vst.msk [vmem:[%s26 + $0xf8] sm:$0xff] %vm35, 0.0
  $region13: #{forward.4} parent=0 // pred_fallthru
    _
  %v68 = vlaneseq
  %v69 = vshrl.u32 %v68, 7
  %v70 = vadd.s32 %v69, 8
  %v71 = vadd.s32 %v69, 16
  %v72 = vadd.s32 %v69, 24
  %v73 = vadd.s32 %v69, 32
  %v74 = vadd.s32 %v69, 40
  %v75 = vadd.s32 %v69, 48
  %v76 = vadd.s32 %v69, 56
  %v77 = vadd.s32 %v69, 64
  %v78 = vadd.s32 %v69, 72
  %v79 = vadd.s32 %v69, 80
  %v80 = vadd.s32 %v69, 88
  %v81 = vadd.s32 %v69, 96
  %v82 = vadd.s32 %v69, 104
  %v83 = vadd.s32 %v69, 112
  %v84 = vadd.s32 %v69, 120
  %v85 = vadd.s32 %v69, 128
  %v86 = vadd.s32 %v69, 136
  %v87 = vadd.s32 %v69, 144
  %v88 = vadd.s32 %v69, 152
  %v89 = vadd.s32 %v69, 160
  %v90 = vadd.s32 %v69, 168
  %v91 = vadd.s32 %v69, 176
  %v92 = vadd.s32 %v69, 184
  %v93 = vadd.s32 %v69, 192
  %v94 = vadd.s32 %v69, 200
  %v95 = vadd.s32 %v69, 208
  %v96 = vadd.s32 %v69, 216
  %v97 = vadd.s32 %v69, 224
  %v98 = vadd.s32 %v69, 232
  %v99 = vadd.s32 %v69, 240
  %v100 = vadd.s32 %v69, 248
  %v101 = vld [vmem:[%s2] sm:$0xf]
  %v102 = vlaneseq
  %v103 = vshrl.u32 %v102, 7
  %v104 = vsub.s32 0, %v103
  %v105 = vrot.slane %v101, %v104
  %v106 = vlaneseq
  %v107 = vshrl.u32 %v106, 7
  %v108 = vsub.s32 1, %v107
  %v109 = vrot.slane %v101, %v108
  %v110 = vlaneseq
  %v111 = vshrl.u32 %v110, 7
  %v112 = vsub.s32 2, %v111
  %v113 = vrot.slane %v101, %v112
  %v114 = vlaneseq
  %v115 = vshrl.u32 %v114, 7
  %v116 = vsub.s32 3, %v115
  %v117 = vrot.slane %v101, %v116
  %vm118 = vcmp.eq.s32.totalorder %v69, %v105
  %vm119 = vcmp.eq.s32.totalorder %v69, %v109
  %vm120 = vcmp.eq.s32.totalorder %v69, %v113
  %vm121 = vcmp.eq.s32.totalorder %v69, %v117
  %vm122 = vcmp.eq.s32.totalorder %v70, %v105
  %vm123 = vcmp.eq.s32.totalorder %v70, %v109
  %vm124 = vcmp.eq.s32.totalorder %v70, %v113
  %vm125 = vcmp.eq.s32.totalorder %v70, %v117
  %vm126 = vcmp.eq.s32.totalorder %v71, %v105
  %vm127 = vcmp.eq.s32.totalorder %v71, %v109
  %vm128 = vcmp.eq.s32.totalorder %v71, %v113
  %vm129 = vcmp.eq.s32.totalorder %v71, %v117
  %vm130 = vcmp.eq.s32.totalorder %v72, %v105
  %vm131 = vcmp.eq.s32.totalorder %v72, %v109
  %vm132 = vcmp.eq.s32.totalorder %v72, %v113
  %vm133 = vcmp.eq.s32.totalorder %v72, %v117
  %vm134 = vcmp.eq.s32.totalorder %v73, %v105
  %vm135 = vcmp.eq.s32.totalorder %v73, %v109
  %vm136 = vcmp.eq.s32.totalorder %v73, %v113
  %vm137 = vcmp.eq.s32.totalorder %v73, %v117
  %vm138 = vcmp.eq.s32.totalorder %v74, %v105
  %vm139 = vcmp.eq.s32.totalorder %v74, %v109
  %vm140 = vcmp.eq.s32.totalorder %v74, %v113
  %vm141 = vcmp.eq.s32.totalorder %v74, %v117
  %vm142 = vcmp.eq.s32.totalorder %v75, %v105
  %vm143 = vcmp.eq.s32.totalorder %v75, %v109
  %vm144 = vcmp.eq.s32.totalorder %v75, %v113
  %vm145 = vcmp.eq.s32.totalorder %v75, %v117
  %vm146 = vcmp.eq.s32.totalorder %v76, %v105
  %vm147 = vcmp.eq.s32.totalorder %v76, %v109
  %vm148 = vcmp.eq.s32.totalorder %v76, %v113
  %vm149 = vcmp.eq.s32.totalorder %v76, %v117
  %vm150 = vcmp.eq.s32.totalorder %v77, %v105
  %vm151 = vcmp.eq.s32.totalorder %v77, %v109
  %vm152 = vcmp.eq.s32.totalorder %v77, %v113
  %vm153 = vcmp.eq.s32.totalorder %v77, %v117
  %vm154 = vcmp.eq.s32.totalorder %v78, %v105
  %vm155 = vcmp.eq.s32.totalorder %v78, %v109
  %vm156 = vcmp.eq.s32.totalorder %v78, %v113
  %vm157 = vcmp.eq.s32.totalorder %v78, %v117
  %vm158 = vcmp.eq.s32.totalorder %v79, %v105
  %vm159 = vcmp.eq.s32.totalorder %v79, %v109
  %vm160 = vcmp.eq.s32.totalorder %v79, %v113
  %vm161 = vcmp.eq.s32.totalorder %v79, %v117
  %vm162 = vcmp.eq.s32.totalorder %v80, %v105
  %vm163 = vcmp.eq.s32.totalorder %v80, %v109
  %vm164 = vcmp.eq.s32.totalorder %v80, %v113
  %vm165 = vcmp.eq.s32.totalorder %v80, %v117
  %vm166 = vcmp.eq.s32.totalorder %v81, %v105
  %vm167 = vcmp.eq.s32.totalorder %v81, %v109
  %vm168 = vcmp.eq.s32.totalorder %v81, %v113
  %vm169 = vcmp.eq.s32.totalorder %v81, %v117
  %vm170 = vcmp.eq.s32.totalorder %v82, %v105
  %vm171 = vcmp.eq.s32.totalorder %v82, %v109
  %vm172 = vcmp.eq.s32.totalorder %v82, %v113
  %vm173 = vcmp.eq.s32.totalorder %v82, %v117
  %vm174 = vcmp.eq.s32.totalorder %v83, %v105
  %vm175 = vcmp.eq.s32.totalorder %v83, %v109
  %vm176 = vcmp.eq.s32.totalorder %v83, %v113
  %vm177 = vcmp.eq.s32.totalorder %v83, %v117
  %vm178 = vcmp.eq.s32.totalorder %v84, %v105
  %vm179 = vcmp.eq.s32.totalorder %v84, %v109
  %vm180 = vcmp.eq.s32.totalorder %v84, %v113
  %vm181 = vcmp.eq.s32.totalorder %v84, %v117
  %vm182 = vcmp.eq.s32.totalorder %v85, %v105
  %vm183 = vcmp.eq.s32.totalorder %v85, %v109
  %vm184 = vcmp.eq.s32.totalorder %v85, %v113
  %vm185 = vcmp.eq.s32.totalorder %v85, %v117
  %vm186 = vcmp.eq.s32.totalorder %v86, %v105
  %vm187 = vcmp.eq.s32.totalorder %v86, %v109
  %vm188 = vcmp.eq.s32.totalorder %v86, %v113
  %vm189 = vcmp.eq.s32.totalorder %v86, %v117
  %vm190 = vcmp.eq.s32.totalorder %v87, %v105
  %vm191 = vcmp.eq.s32.totalorder %v87, %v109
  %vm192 = vcmp.eq.s32.totalorder %v87, %v113
  %vm193 = vcmp.eq.s32.totalorder %v87, %v117
  %vm194 = vcmp.eq.s32.totalorder %v88, %v105
  %vm195 = vcmp.eq.s32.totalorder %v88, %v109
  %vm196 = vcmp.eq.s32.totalorder %v88, %v113
  %vm197 = vcmp.eq.s32.totalorder %v88, %v117
  %vm198 = vcmp.eq.s32.totalorder %v89, %v105
  %vm199 = vcmp.eq.s32.totalorder %v89, %v109
  %vm200 = vcmp.eq.s32.totalorder %v89, %v113
  %vm201 = vcmp.eq.s32.totalorder %v89, %v117
  %vm202 = vcmp.eq.s32.totalorder %v90, %v105
  %vm203 = vcmp.eq.s32.totalorder %v90, %v109
  %vm204 = vcmp.eq.s32.totalorder %v90, %v113
  %vm205 = vcmp.eq.s32.totalorder %v90, %v117
  %vm206 = vcmp.eq.s32.totalorder %v91, %v105
  %vm207 = vcmp.eq.s32.totalorder %v91, %v109
  %vm208 = vcmp.eq.s32.totalorder %v91, %v113
  %vm209 = vcmp.eq.s32.totalorder %v91, %v117
  %vm210 = vcmp.eq.s32.totalorder %v92, %v105
  %vm211 = vcmp.eq.s32.totalorder %v92, %v109
  %vm212 = vcmp.eq.s32.totalorder %v92, %v113
  %vm213 = vcmp.eq.s32.totalorder %v92, %v117
  %vm214 = vcmp.eq.s32.totalorder %v93, %v105
  %vm215 = vcmp.eq.s32.totalorder %v93, %v109
  %vm216 = vcmp.eq.s32.totalorder %v93, %v113
  %vm217 = vcmp.eq.s32.totalorder %v93, %v117
  %vm218 = vcmp.eq.s32.totalorder %v94, %v105
  %vm219 = vcmp.eq.s32.totalorder %v94, %v109
  %vm220 = vcmp.eq.s32.totalorder %v94, %v113
  %vm221 = vcmp.eq.s32.totalorder %v94, %v117
  %vm222 = vcmp.eq.s32.totalorder %v95, %v105
  %vm223 = vcmp.eq.s32.totalorder %v95, %v109
  %vm224 = vcmp.eq.s32.totalorder %v95, %v113
  %vm225 = vcmp.eq.s32.totalorder %v95, %v117
  %vm226 = vcmp.eq.s32.totalorder %v96, %v105
  %vm227 = vcmp.eq.s32.totalorder %v96, %v109
  %vm228 = vcmp.eq.s32.totalorder %v96, %v113
  %vm229 = vcmp.eq.s32.totalorder %v96, %v117
  %vm230 = vcmp.eq.s32.totalorder %v97, %v105
  %vm231 = vcmp.eq.s32.totalorder %v97, %v109
  %vm232 = vcmp.eq.s32.totalorder %v97, %v113
  %vm233 = vcmp.eq.s32.totalorder %v97, %v117
  %vm234 = vcmp.eq.s32.totalorder %v98, %v105
  %vm235 = vcmp.eq.s32.totalorder %v98, %v109
  %vm236 = vcmp.eq.s32.totalorder %v98, %v113
  %vm237 = vcmp.eq.s32.totalorder %v98, %v117
  %vm238 = vcmp.eq.s32.totalorder %v99, %v105
  %vm239 = vcmp.eq.s32.totalorder %v99, %v109
  %vm240 = vcmp.eq.s32.totalorder %v99, %v113
  %vm241 = vcmp.eq.s32.totalorder %v99, %v117
  %vm242 = vcmp.eq.s32.totalorder %v100, %v105
  %vm243 = vcmp.eq.s32.totalorder %v100, %v109
  %vm244 = vcmp.eq.s32.totalorder %v100, %v113
  %vm245 = vcmp.eq.s32.totalorder %v100, %v117
  %v246 = vsel %vm118, 1, 0
  %v247 = vsel %vm119, 1, 0
  %v248 = vsel %vm120, 1, 0
  %v249 = vsel %vm121, 1, 0
  %v250 = vsel %vm122, 1, 0
  %v251 = vsel %vm123, 1, 0
  %v252 = vsel %vm124, 1, 0
  %v253 = vsel %vm125, 1, 0
  %v254 = vsel %vm126, 1, 0
  %v255 = vsel %vm127, 1, 0
  %v256 = vsel %vm128, 1, 0
  %v257 = vsel %vm129, 1, 0
  %v258 = vsel %vm130, 1, 0
  %v259 = vsel %vm131, 1, 0
  %v260 = vsel %vm132, 1, 0
  %v261 = vsel %vm133, 1, 0
  %v262 = vsel %vm134, 1, 0
  %v263 = vsel %vm135, 1, 0
  %v264 = vsel %vm136, 1, 0
  %v265 = vsel %vm137, 1, 0
  %v266 = vsel %vm138, 1, 0
  %v267 = vsel %vm139, 1, 0
  %v268 = vsel %vm140, 1, 0
  %v269 = vsel %vm141, 1, 0
  %v270 = vsel %vm142, 1, 0
  %v271 = vsel %vm143, 1, 0
  %v272 = vsel %vm144, 1, 0
  %v273 = vsel %vm145, 1, 0
  %v274 = vsel %vm146, 1, 0
  %v275 = vsel %vm147, 1, 0
  %v276 = vsel %vm148, 1, 0
  %v277 = vsel %vm149, 1, 0
  %v278 = vsel %vm150, 1, 0
  %v279 = vsel %vm151, 1, 0
  %v280 = vsel %vm152, 1, 0
  %v281 = vsel %vm153, 1, 0
  %v282 = vsel %vm154, 1, 0
  %v283 = vsel %vm155, 1, 0
  %v284 = vsel %vm156, 1, 0
  %v285 = vsel %vm157, 1, 0
  %v286 = vsel %vm158, 1, 0
  %v287 = vsel %vm159, 1, 0
  %v288 = vsel %vm160, 1, 0
  %v289 = vsel %vm161, 1, 0
  %v290 = vsel %vm162, 1, 0
  %v291 = vsel %vm163, 1, 0
  %v292 = vsel %vm164, 1, 0
  %v293 = vsel %vm165, 1, 0
  %v294 = vsel %vm166, 1, 0
  %v295 = vsel %vm167, 1, 0
  %v296 = vsel %vm168, 1, 0
  %v297 = vsel %vm169, 1, 0
  %v298 = vsel %vm170, 1, 0
  %v299 = vsel %vm171, 1, 0
  %v300 = vsel %vm172, 1, 0
  %v301 = vsel %vm173, 1, 0
  %v302 = vsel %vm174, 1, 0
  %v303 = vsel %vm175, 1, 0
  %v304 = vsel %vm176, 1, 0
  %v305 = vsel %vm177, 1, 0
  %v306 = vsel %vm178, 1, 0
  %v307 = vsel %vm179, 1, 0
  %v308 = vsel %vm180, 1, 0
  %v309 = vsel %vm181, 1, 0
  %v310 = vsel %vm182, 1, 0
  %v311 = vsel %vm183, 1, 0
  %v312 = vsel %vm184, 1, 0
  %v313 = vsel %vm185, 1, 0
  %v314 = vsel %vm186, 1, 0
  %v315 = vsel %vm187, 1, 0
  %v316 = vsel %vm188, 1, 0
  %v317 = vsel %vm189, 1, 0
  %v318 = vsel %vm190, 1, 0
  %v319 = vsel %vm191, 1, 0
  %v320 = vsel %vm192, 1, 0
  %v321 = vsel %vm193, 1, 0
  %v322 = vsel %vm194, 1, 0
  %v323 = vsel %vm195, 1, 0
  %v324 = vsel %vm196, 1, 0
  %v325 = vsel %vm197, 1, 0
  %v326 = vsel %vm198, 1, 0
  %v327 = vsel %vm199, 1, 0
  %v328 = vsel %vm200, 1, 0
  %v329 = vsel %vm201, 1, 0
  %v330 = vsel %vm202, 1, 0
  %v331 = vsel %vm203, 1, 0
  %v332 = vsel %vm204, 1, 0
  %v333 = vsel %vm205, 1, 0
  %v334 = vsel %vm206, 1, 0
  %v335 = vsel %vm207, 1, 0
  %v336 = vsel %vm208, 1, 0
  %v337 = vsel %vm209, 1, 0
  %v338 = vsel %vm210, 1, 0
  %v339 = vsel %vm211, 1, 0
  %v340 = vsel %vm212, 1, 0
  %v341 = vsel %vm213, 1, 0
  %v342 = vsel %vm214, 1, 0
  %v343 = vsel %vm215, 1, 0
  %v344 = vsel %vm216, 1, 0
  %v345 = vsel %vm217, 1, 0
  %v346 = vsel %vm218, 1, 0
  %v347 = vsel %vm219, 1, 0
  %v348 = vsel %vm220, 1, 0
  %v349 = vsel %vm221, 1, 0
  %v350 = vsel %vm222, 1, 0
  %v351 = vsel %vm223, 1, 0
  %v352 = vsel %vm224, 1, 0
  %v353 = vsel %vm225, 1, 0
  %v354 = vsel %vm226, 1, 0
  %v355 = vsel %vm227, 1, 0
  %v356 = vsel %vm228, 1, 0
  %v357 = vsel %vm229, 1, 0
  %v358 = vsel %vm230, 1, 0
  %v359 = vsel %vm231, 1, 0
  %v360 = vsel %vm232, 1, 0
  %v361 = vsel %vm233, 1, 0
  %v362 = vsel %vm234, 1, 0
  %v363 = vsel %vm235, 1, 0
  %v364 = vsel %vm236, 1, 0
  %v365 = vsel %vm237, 1, 0
  %v366 = vsel %vm238, 1, 0
  %v367 = vsel %vm239, 1, 0
  %v368 = vsel %vm240, 1, 0
  %v369 = vsel %vm241, 1, 0
  %v370 = vsel %vm242, 1, 0
  %v371 = vsel %vm243, 1, 0
  %v372 = vsel %vm244, 1, 0
  %v373 = vsel %vm245, 1, 0
  %v374 = vcvt.s32.f32 %v246
  %v375 = vcvt.s32.f32 %v247
  %v376 = vcvt.s32.f32 %v248
  %v377 = vcvt.s32.f32 %v249
  %v378 = vcvt.s32.f32 %v250
  %v379 = vcvt.s32.f32 %v251
  %v380 = vcvt.s32.f32 %v252
  %v381 = vcvt.s32.f32 %v253
  %v382 = vcvt.s32.f32 %v254
  %v383 = vcvt.s32.f32 %v255
  %v384 = vcvt.s32.f32 %v256
  %v385 = vcvt.s32.f32 %v257
  %v386 = vcvt.s32.f32 %v258
  %v387 = vcvt.s32.f32 %v259
  %v388 = vcvt.s32.f32 %v260
  %v389 = vcvt.s32.f32 %v261
  %v390 = vcvt.s32.f32 %v262
  %v391 = vcvt.s32.f32 %v263
  %v392 = vcvt.s32.f32 %v264
  %v393 = vcvt.s32.f32 %v265
  %v394 = vcvt.s32.f32 %v266
  %v395 = vcvt.s32.f32 %v267
  %v396 = vcvt.s32.f32 %v268
  %v397 = vcvt.s32.f32 %v269
  %v398 = vcvt.s32.f32 %v270
  %v399 = vcvt.s32.f32 %v271
  %v400 = vcvt.s32.f32 %v272
  %v401 = vcvt.s32.f32 %v273
  %v402 = vcvt.s32.f32 %v274
  %v403 = vcvt.s32.f32 %v275
  %v404 = vcvt.s32.f32 %v276
  %v405 = vcvt.s32.f32 %v277
  %v406 = vcvt.s32.f32 %v278
  %v407 = vcvt.s32.f32 %v279
  %v408 = vcvt.s32.f32 %v280
  %v409 = vcvt.s32.f32 %v281
  %v410 = vcvt.s32.f32 %v282
  %v411 = vcvt.s32.f32 %v283
  %v412 = vcvt.s32.f32 %v284
  %v413 = vcvt.s32.f32 %v285
  %v414 = vcvt.s32.f32 %v286
  %v415 = vcvt.s32.f32 %v287
  %v416 = vcvt.s32.f32 %v288
  %v417 = vcvt.s32.f32 %v289
  %v418 = vcvt.s32.f32 %v290
  %v419 = vcvt.s32.f32 %v291
  %v420 = vcvt.s32.f32 %v292
  %v421 = vcvt.s32.f32 %v293
  %v422 = vcvt.s32.f32 %v294
  %v423 = vcvt.s32.f32 %v295
  %v424 = vcvt.s32.f32 %v296
  %v425 = vcvt.s32.f32 %v297
  %v426 = vcvt.s32.f32 %v298
  %v427 = vcvt.s32.f32 %v299
  %v428 = vcvt.s32.f32 %v300
  %v429 = vcvt.s32.f32 %v301
  %v430 = vcvt.s32.f32 %v302
  %v431 = vcvt.s32.f32 %v303
  %v432 = vcvt.s32.f32 %v304
  %v433 = vcvt.s32.f32 %v305
  %v434 = vcvt.s32.f32 %v306
  %v435 = vcvt.s32.f32 %v307
  %v436 = vcvt.s32.f32 %v308
  %v437 = vcvt.s32.f32 %v309
  %v438 = vcvt.s32.f32 %v310
  %v439 = vcvt.s32.f32 %v311
  %v440 = vcvt.s32.f32 %v312
  %v441 = vcvt.s32.f32 %v313
  %v442 = vcvt.s32.f32 %v314
  %v443 = vcvt.s32.f32 %v315
  %v444 = vcvt.s32.f32 %v316
  %v445 = vcvt.s32.f32 %v317
  %v446 = vcvt.s32.f32 %v318
  %v447 = vcvt.s32.f32 %v319
  %v448 = vcvt.s32.f32 %v320
  %v449 = vcvt.s32.f32 %v321
  %v450 = vcvt.s32.f32 %v322
  %v451 = vcvt.s32.f32 %v323
  %v452 = vcvt.s32.f32 %v324
  %v453 = vcvt.s32.f32 %v325
  %v454 = vcvt.s32.f32 %v326
  %v455 = vcvt.s32.f32 %v327
  %v456 = vcvt.s32.f32 %v328
  %v457 = vcvt.s32.f32 %v329
  %v458 = vcvt.s32.f32 %v330
  %v459 = vcvt.s32.f32 %v331
  %v460 = vcvt.s32.f32 %v332
  %v461 = vcvt.s32.f32 %v333
  %v462 = vcvt.s32.f32 %v334
  %v463 = vcvt.s32.f32 %v335
  %v464 = vcvt.s32.f32 %v336
  %v465 = vcvt.s32.f32 %v337
  %v466 = vcvt.s32.f32 %v338
  %v467 = vcvt.s32.f32 %v339
  %v468 = vcvt.s32.f32 %v340
  %v469 = vcvt.s32.f32 %v341
  %v470 = vcvt.s32.f32 %v342
  %v471 = vcvt.s32.f32 %v343
  %v472 = vcvt.s32.f32 %v344
  %v473 = vcvt.s32.f32 %v345
  %v474 = vcvt.s32.f32 %v346
  %v475 = vcvt.s32.f32 %v347
  %v476 = vcvt.s32.f32 %v348
  %v477 = vcvt.s32.f32 %v349
  %v478 = vcvt.s32.f32 %v350
  %v479 = vcvt.s32.f32 %v351
  %v480 = vcvt.s32.f32 %v352
  %v481 = vcvt.s32.f32 %v353
  %v482 = vcvt.s32.f32 %v354
  %v483 = vcvt.s32.f32 %v355
  %v484 = vcvt.s32.f32 %v356
  %v485 = vcvt.s32.f32 %v357
  %v486 = vcvt.s32.f32 %v358
  %v487 = vcvt.s32.f32 %v359
  %v488 = vcvt.s32.f32 %v360
  %v489 = vcvt.s32.f32 %v361
  %v490 = vcvt.s32.f32 %v362
  %v491 = vcvt.s32.f32 %v363
  %v492 = vcvt.s32.f32 %v364
  %v493 = vcvt.s32.f32 %v365
  %v494 = vcvt.s32.f32 %v366
  %v495 = vcvt.s32.f32 %v367
  %v496 = vcvt.s32.f32 %v368
  %v497 = vcvt.s32.f32 %v369
  %v498 = vcvt.s32.f32 %v370
  %v499 = vcvt.s32.f32 %v371
  %v500 = vcvt.s32.f32 %v372
  %v501 = vcvt.s32.f32 %v373
  %v502 = vpack.c.bf16 %v378, %v374
  %v503 = vpack.c.bf16 %v379, %v375
  %v504 = vpack.c.bf16 %v380, %v376
  %v505 = vpack.c.bf16 %v381, %v377
  %v506 = vpack.c.bf16 %v386, %v382
  %v507 = vpack.c.bf16 %v387, %v383
  %v508 = vpack.c.bf16 %v388, %v384
  %v509 = vpack.c.bf16 %v389, %v385
  %v510 = vpack.c.bf16 %v394, %v390
  %v511 = vpack.c.bf16 %v395, %v391
  %v512 = vpack.c.bf16 %v396, %v392
  %v513 = vpack.c.bf16 %v397, %v393
  %v514 = vpack.c.bf16 %v402, %v398
  %v515 = vpack.c.bf16 %v403, %v399
  %v516 = vpack.c.bf16 %v404, %v400
  %v517 = vpack.c.bf16 %v405, %v401
  %v518 = vpack.c.bf16 %v410, %v406
  %v519 = vpack.c.bf16 %v411, %v407
  %v520 = vpack.c.bf16 %v412, %v408
  %v521 = vpack.c.bf16 %v413, %v409
  %v522 = vpack.c.bf16 %v418, %v414
  %v523 = vpack.c.bf16 %v419, %v415
  %v524 = vpack.c.bf16 %v420, %v416
  %v525 = vpack.c.bf16 %v421, %v417
  %v526 = vpack.c.bf16 %v426, %v422
  %v527 = vpack.c.bf16 %v427, %v423
  %v528 = vpack.c.bf16 %v428, %v424
  %v529 = vpack.c.bf16 %v429, %v425
  %v530 = vpack.c.bf16 %v434, %v430
  %v531 = vpack.c.bf16 %v435, %v431
  %v532 = vpack.c.bf16 %v436, %v432
  %v533 = vpack.c.bf16 %v437, %v433
  %v534 = vpack.c.bf16 %v442, %v438
  %v535 = vpack.c.bf16 %v443, %v439
  %v536 = vpack.c.bf16 %v444, %v440
  %v537 = vpack.c.bf16 %v445, %v441
  %v538 = vpack.c.bf16 %v450, %v446
  %v539 = vpack.c.bf16 %v451, %v447
  %v540 = vpack.c.bf16 %v452, %v448
  %v541 = vpack.c.bf16 %v453, %v449
  %v542 = vpack.c.bf16 %v458, %v454
  %v543 = vpack.c.bf16 %v459, %v455
  %v544 = vpack.c.bf16 %v460, %v456
  %v545 = vpack.c.bf16 %v461, %v457
  %v546 = vpack.c.bf16 %v466, %v462
  %v547 = vpack.c.bf16 %v467, %v463
  %v548 = vpack.c.bf16 %v468, %v464
  %v549 = vpack.c.bf16 %v469, %v465
  %v550 = vpack.c.bf16 %v474, %v470
  %v551 = vpack.c.bf16 %v475, %v471
  %v552 = vpack.c.bf16 %v476, %v472
  %v553 = vpack.c.bf16 %v477, %v473
  %v554 = vpack.c.bf16 %v482, %v478
  %v555 = vpack.c.bf16 %v483, %v479
  %v556 = vpack.c.bf16 %v484, %v480
  %v557 = vpack.c.bf16 %v485, %v481
  %v558 = vpack.c.bf16 %v490, %v486
  %v559 = vpack.c.bf16 %v491, %v487
  %v560 = vpack.c.bf16 %v492, %v488
  %v561 = vpack.c.bf16 %v493, %v489
  %v562 = vpack.c.bf16 %v498, %v494
  %v563 = vpack.c.bf16 %v499, %v495
  %v564 = vpack.c.bf16 %v500, %v496
  %v565 = vpack.c.bf16 %v501, %v497
  %v566 = vld [vmem:[%s26] sm:$0xff]
  %v567 = vld [vmem:[%s26 + $0x8] sm:$0xff]
  %v568 = vld [vmem:[%s26 + $0x10] sm:$0xff]
  %v569 = vld [vmem:[%s26 + $0x18] sm:$0xff]
  %v570 = vld [vmem:[%s26 + $0x20] sm:$0xff]
  %v571 = vld [vmem:[%s26 + $0x28] sm:$0xff]
  %v572 = vld [vmem:[%s26 + $0x30] sm:$0xff]
  %v573 = vld [vmem:[%s26 + $0x38] sm:$0xff]
  %v574 = vld [vmem:[%s26 + $0x40] sm:$0xff]
  %v575 = vld [vmem:[%s26 + $0x48] sm:$0xff]
  %v576 = vld [vmem:[%s26 + $0x50] sm:$0xff]
  %v577 = vld [vmem:[%s26 + $0x58] sm:$0xff]
  %v578 = vld [vmem:[%s26 + $0x60] sm:$0xff]
  %v579 = vld [vmem:[%s26 + $0x68] sm:$0xff]
  %v580 = vld [vmem:[%s26 + $0x70] sm:$0xff]
  %v581 = vld [vmem:[%s26 + $0x78] sm:$0xff]
  %v582 = vld [vmem:[%s26 + $0x80] sm:$0xff]
  %v583 = vld [vmem:[%s26 + $0x88] sm:$0xff]
  %v584 = vld [vmem:[%s26 + $0x90] sm:$0xff]
  %v585 = vld [vmem:[%s26 + $0x98] sm:$0xff]
  %v586 = vld [vmem:[%s26 + $0xa0] sm:$0xff]
  %v587 = vld [vmem:[%s26 + $0xa8] sm:$0xff]
  %v588 = vld [vmem:[%s26 + $0xb0] sm:$0xff]
  %v589 = vld [vmem:[%s26 + $0xb8] sm:$0xff]
  %v590 = vld [vmem:[%s26 + $0xc0] sm:$0xff]
  %v591 = vld [vmem:[%s26 + $0xc8] sm:$0xff]
  %v592 = vld [vmem:[%s26 + $0xd0] sm:$0xff]
  %v593 = vld [vmem:[%s26 + $0xd8] sm:$0xff]
  %v594 = vld [vmem:[%s26 + $0xe0] sm:$0xff]
  %v595 = vld [vmem:[%s26 + $0xe8] sm:$0xff]
  %v596 = vld [vmem:[%s26 + $0xf0] sm:$0xff]
  %v597 = vld [vmem:[%s26 + $0xf8] sm:$0xff]
  %v598 = vld [vmem:[%s3] sm:$0xf]
  %v599 = vld [vmem:[%s3 + $0x4] sm:$0xf]
  %v600 = vld [vmem:[%s3 + $0x8] sm:$0xf]
  %v601 = vld [vmem:[%s3 + $0xc] sm:$0xf]
  %v602 = vld [vmem:[%s3 + $0x10] sm:$0xf]
  %v603 = vld [vmem:[%s3 + $0x14] sm:$0xf]
  %v604 = vld [vmem:[%s3 + $0x18] sm:$0xf]
  %v605 = vld [vmem:[%s3 + $0x1c] sm:$0xf]
  %v606 = vld [vmem:[%s3 + $0x20] sm:$0xf]
  %v607 = vld [vmem:[%s3 + $0x24] sm:$0xf]
  %v608 = vld [vmem:[%s3 + $0x28] sm:$0xf]
  %v609 = vld [vmem:[%s3 + $0x2c] sm:$0xf]
  %v610 = vld [vmem:[%s3 + $0x30] sm:$0xf]
  %v611 = vld [vmem:[%s3 + $0x34] sm:$0xf]
  %v612 = vld [vmem:[%s3 + $0x38] sm:$0xf]
  %v613 = vld [vmem:[%s3 + $0x3c] sm:$0xf]
  %v614 = vld [vmem:[%s3 + $0x40] sm:$0xf]
  %v615 = vld [vmem:[%s3 + $0x44] sm:$0xf]
  %v616 = vld [vmem:[%s3 + $0x48] sm:$0xf]
  %v617 = vld [vmem:[%s3 + $0x4c] sm:$0xf]
  %v618 = vld [vmem:[%s3 + $0x50] sm:$0xf]
  %v619 = vld [vmem:[%s3 + $0x54] sm:$0xf]
  %v620 = vld [vmem:[%s3 + $0x58] sm:$0xf]
  %v621 = vld [vmem:[%s3 + $0x5c] sm:$0xf]
  %v622 = vld [vmem:[%s3 + $0x60] sm:$0xf]
  %v623 = vld [vmem:[%s3 + $0x64] sm:$0xf]
  %v624 = vld [vmem:[%s3 + $0x68] sm:$0xf]
  %v625 = vld [vmem:[%s3 + $0x6c] sm:$0xf]
  %v626 = vld [vmem:[%s3 + $0x70] sm:$0xf]
  %v627 = vld [vmem:[%s3 + $0x74] sm:$0xf]
  %v628 = vld [vmem:[%s3 + $0x78] sm:$0xf]
  %v629 = vld [vmem:[%s3 + $0x7c] sm:$0xf]
  %v630 = vld [vmem:[%s3 + $0x80] sm:$0xf]
  %v631 = vld [vmem:[%s3 + $0x84] sm:$0xf]
  %v632 = vld [vmem:[%s3 + $0x88] sm:$0xf]
  %v633 = vld [vmem:[%s3 + $0x8c] sm:$0xf]
  %v634 = vld [vmem:[%s3 + $0x90] sm:$0xf]
  %v635 = vld [vmem:[%s3 + $0x94] sm:$0xf]
  %v636 = vld [vmem:[%s3 + $0x98] sm:$0xf]
  %v637 = vld [vmem:[%s3 + $0x9c] sm:$0xf]
  %v638 = vld [vmem:[%s3 + $0xa0] sm:$0xf]
  %v639 = vld [vmem:[%s3 + $0xa4] sm:$0xf]
  %v640 = vld [vmem:[%s3 + $0xa8] sm:$0xf]
  %v641 = vld [vmem:[%s3 + $0xac] sm:$0xf]
  %v642 = vld [vmem:[%s3 + $0xb0] sm:$0xf]
  %v643 = vld [vmem:[%s3 + $0xb4] sm:$0xf]
  %v644 = vld [vmem:[%s3 + $0xb8] sm:$0xf]
  %v645 = vld [vmem:[%s3 + $0xbc] sm:$0xf]
  %v646 = vld [vmem:[%s3 + $0xc0] sm:$0xf]
  %v647 = vld [vmem:[%s3 + $0xc4] sm:$0xf]
  %v648 = vld [vmem:[%s3 + $0xc8] sm:$0xf]
  %v649 = vld [vmem:[%s3 + $0xcc] sm:$0xf]
  %v650 = vld [vmem:[%s3 + $0xd0] sm:$0xf]
  %v651 = vld [vmem:[%s3 + $0xd4] sm:$0xf]
  %v652 = vld [vmem:[%s3 + $0xd8] sm:$0xf]
  %v653 = vld [vmem:[%s3 + $0xdc] sm:$0xf]
  %v654 = vld [vmem:[%s3 + $0xe0] sm:$0xf]
  %v655 = vld [vmem:[%s3 + $0xe4] sm:$0xf]
  %v656 = vld [vmem:[%s3 + $0xe8] sm:$0xf]
  %v657 = vld [vmem:[%s3 + $0xec] sm:$0xf]
  %v658 = vld [vmem:[%s3 + $0xf0] sm:$0xf]
  %v659 = vld [vmem:[%s3 + $0xf4] sm:$0xf]
  %v660 = vld [vmem:[%s3 + $0xf8] sm:$0xf]
  %v661 = vld [vmem:[%s3 + $0xfc] sm:$0xf]
  %v726 = vunpack.c.l.b16 %v598
  %v727 = vunpack.c.l.b16 %v599
  %v728 = vunpack.c.l.b16 %v600
  %v729 = vunpack.c.l.b16 %v601
  %v730 = vunpack.c.l.b16 %v602
  %v731 = vunpack.c.l.b16 %v603
  %v732 = vunpack.c.l.b16 %v604
  %v733 = vunpack.c.l.b16 %v605
  %v734 = vunpack.c.l.b16 %v606
  %v735 = vunpack.c.l.b16 %v607
  %v736 = vunpack.c.l.b16 %v608
  %v737 = vunpack.c.l.b16 %v609
  %v738 = vunpack.c.l.b16 %v610
  %v739 = vunpack.c.l.b16 %v611
  %v740 = vunpack.c.l.b16 %v612
  %v741 = vunpack.c.l.b16 %v613
  %v742 = vunpack.c.l.b16 %v614
  %v743 = vunpack.c.l.b16 %v615
  %v744 = vunpack.c.l.b16 %v616
  %v745 = vunpack.c.l.b16 %v617
  %v746 = vunpack.c.l.b16 %v618
  %v747 = vunpack.c.l.b16 %v619
  %v748 = vunpack.c.l.b16 %v620
  %v749 = vunpack.c.l.b16 %v621
  %v750 = vunpack.c.l.b16 %v622
  %v751 = vunpack.c.l.b16 %v623
  %v752 = vunpack.c.l.b16 %v624
  %v753 = vunpack.c.l.b16 %v625
  %v754 = vunpack.c.l.b16 %v626
  %v755 = vunpack.c.l.b16 %v627
  %v756 = vunpack.c.l.b16 %v628
  %v757 = vunpack.c.l.b16 %v629
  %v758 = vunpack.c.l.b16 %v630
  %v759 = vunpack.c.l.b16 %v631
  %v760 = vunpack.c.l.b16 %v632
  %v761 = vunpack.c.l.b16 %v633
  %v762 = vunpack.c.l.b16 %v634
  %v763 = vunpack.c.l.b16 %v635
  %v764 = vunpack.c.l.b16 %v636
  %v765 = vunpack.c.l.b16 %v637
  %v766 = vunpack.c.l.b16 %v638
  %v767 = vunpack.c.l.b16 %v639
  %v768 = vunpack.c.l.b16 %v640
  %v769 = vunpack.c.l.b16 %v641
  %v770 = vunpack.c.l.b16 %v642
  %v771 = vunpack.c.l.b16 %v643
  %v772 = vunpack.c.l.b16 %v644
  %v773 = vunpack.c.l.b16 %v645
  %v774 = vunpack.c.l.b16 %v646
  %v775 = vunpack.c.l.b16 %v647
  %v776 = vunpack.c.l.b16 %v648
  %v777 = vunpack.c.l.b16 %v649
  %v778 = vunpack.c.l.b16 %v650
  %v779 = vunpack.c.l.b16 %v651
  %v780 = vunpack.c.l.b16 %v652
  %v781 = vunpack.c.l.b16 %v653
  %v782 = vunpack.c.l.b16 %v654
  %v783 = vunpack.c.l.b16 %v655
  %v784 = vunpack.c.l.b16 %v656
  %v785 = vunpack.c.l.b16 %v657
  %v786 = vunpack.c.l.b16 %v658
  %v787 = vunpack.c.l.b16 %v659
  %v788 = vunpack.c.l.b16 %v660
  %v789 = vunpack.c.l.b16 %v661
  %v790 = vpack.c.b16 %v727, %v726
  %v791 = vpack.c.b16 %v729, %v728
  %v792 = vpack.c.b16 %v731, %v730
  %v793 = vpack.c.b16 %v733, %v732
  %v794 = vpack.c.b16 %v735, %v734
  %v795 = vpack.c.b16 %v737, %v736
  %v796 = vpack.c.b16 %v739, %v738
  %v797 = vpack.c.b16 %v741, %v740
  %v798 = vpack.c.b16 %v743, %v742
  %v799 = vpack.c.b16 %v745, %v744
  %v800 = vpack.c.b16 %v747, %v746
  %v801 = vpack.c.b16 %v749, %v748
  %v802 = vpack.c.b16 %v751, %v750
  %v803 = vpack.c.b16 %v753, %v752
  %v804 = vpack.c.b16 %v755, %v754
  %v805 = vpack.c.b16 %v757, %v756
  %v806 = vpack.c.b16 %v759, %v758
  %v807 = vpack.c.b16 %v761, %v760
  %v808 = vpack.c.b16 %v763, %v762
  %v809 = vpack.c.b16 %v765, %v764
  %v810 = vpack.c.b16 %v767, %v766
  %v811 = vpack.c.b16 %v769, %v768
  %v812 = vpack.c.b16 %v771, %v770
  %v813 = vpack.c.b16 %v773, %v772
  %v814 = vpack.c.b16 %v775, %v774
  %v815 = vpack.c.b16 %v777, %v776
  %v816 = vpack.c.b16 %v779, %v778
  %v817 = vpack.c.b16 %v781, %v780
  %v818 = vpack.c.b16 %v783, %v782
  %v819 = vpack.c.b16 %v785, %v784
  %v820 = vpack.c.b16 %v787, %v786
  %v821 = vpack.c.b16 %v789, %v788
  %854 = vmatprep.subr.bf16.mxu0 0
  %855 = vmatpush1.bf16.msra.mxu0 %v797
  %856 = vmatprep.subr.bf16.mxu0 0
  %857 = vmatpush1.bf16.msra.mxu0 %v796
  %858 = vmatprep.subr.bf16.mxu0 0
  %859 = vmatpush1.bf16.msra.mxu0 %v795
  %860 = vmatprep.subr.bf16.mxu0 0
  %861 = vmatpush1.bf16.msra.mxu0 %v794
  %862 = vmatprep.subr.bf16.mxu0 0
  %863 = vmatpush1.bf16.msra.mxu0 %v793
  %864 = vmatprep.subr.bf16.mxu0 0
  %865 = vmatpush1.bf16.msra.mxu0 %v792
  %866 = vmatprep.subr.bf16.mxu0 0
  %867 = vmatpush1.bf16.msra.mxu0 %v791
  %868 = vmatprep.subr.bf16.mxu0 0
  %869 = vmatpush1.bf16.msra.mxu0 %v790
  %870 = vmatprep.subr.bf16.mxu0 0
  %871 = vmatpush2.bf16.msra.mxu0 %v805
  %872 = vmatprep.subr.bf16.mxu0 0
  %873 = vmatpush2.bf16.msra.mxu0 %v804
  %874 = vmatprep.subr.bf16.mxu0 0
  %875 = vmatpush2.bf16.msra.mxu0 %v803
  %876 = vmatprep.subr.bf16.mxu0 0
  %877 = vmatpush2.bf16.msra.mxu0 %v802
  %878 = vmatprep.subr.bf16.mxu0 0
  %879 = vmatpush2.bf16.msra.mxu0 %v801
  %880 = vmatprep.subr.bf16.mxu0 0
  %881 = vmatpush2.bf16.msra.mxu0 %v800
  %882 = vmatprep.subr.bf16.mxu0 0
  %883 = vmatpush2.bf16.msra.mxu0 %v799
  %884 = vmatprep.subr.bf16.mxu0 0
  %885 = vmatpush2.bf16.msra.mxu0 %v798
  %886 = vmatprep.mubr.bf16.mxu0 %v503
  %887 = vmatmul.mubr.bf16.gmra.mxu0 %v502
  %v888 = vpop.f32.mrf.mxu0
  %v889 = vadd.f32 0.0, %v888
  %v890 = vpop.f32.mrf.mxu0
  %v891 = vpop.f32.mrf.mxu0
  %v892 = vadd.f32 0.0, %v891
  %v893 = vpop.f32.mrf.mxu0
  %894 = vmatprep.mubr.bf16.mxu0 %v507
  %895 = vmatmul.mubr.bf16.gmra.mxu0 %v506
  %v896 = vpop.f32.mrf.mxu0
  %v897 = vadd.f32 0.0, %v896
  %v898 = vpop.f32.mrf.mxu0
  %v899 = vpop.f32.mrf.mxu0
  %v900 = vadd.f32 0.0, %v899
  %v901 = vpop.f32.mrf.mxu0
  %902 = vmatprep.mubr.bf16.mxu0 %v511
  %903 = vmatmul.mubr.bf16.gmra.mxu0 %v510
  %v904 = vpop.f32.mrf.mxu0
  %v905 = vadd.f32 0.0, %v904
  %v906 = vpop.f32.mrf.mxu0
  %v907 = vpop.f32.mrf.mxu0
  %v908 = vadd.f32 0.0, %v907
  %v909 = vpop.f32.mrf.mxu0
  %910 = vmatprep.mubr.bf16.mxu0 %v515
  %911 = vmatmul.mubr.bf16.gmra.mxu0 %v514
  %v912 = vpop.f32.mrf.mxu0
  %v913 = vadd.f32 0.0, %v912
  %v914 = vpop.f32.mrf.mxu0
  %v915 = vpop.f32.mrf.mxu0
  %v916 = vadd.f32 0.0, %v915
  %v917 = vpop.f32.mrf.mxu0
  %918 = vmatprep.mubr.bf16.mxu0 %v519
  %919 = vmatmul.mubr.bf16.gmra.mxu0 %v518
  %v920 = vpop.f32.mrf.mxu0
  %v921 = vadd.f32 0.0, %v920
  %v922 = vpop.f32.mrf.mxu0
  %v923 = vpop.f32.mrf.mxu0
  %v924 = vadd.f32 0.0, %v923
  %v925 = vpop.f32.mrf.mxu0
  %926 = vmatprep.mubr.bf16.mxu0 %v523
  %927 = vmatmul.mubr.bf16.gmra.mxu0 %v522
  %v928 = vpop.f32.mrf.mxu0
  %v929 = vadd.f32 0.0, %v928
  %v930 = vpop.f32.mrf.mxu0
  %v931 = vpop.f32.mrf.mxu0
  %v932 = vadd.f32 0.0, %v931
  %v933 = vpop.f32.mrf.mxu0
  %934 = vmatprep.mubr.bf16.mxu0 %v527
  %935 = vmatmul.mubr.bf16.gmra.mxu0 %v526
  %v936 = vpop.f32.mrf.mxu0
  %v937 = vadd.f32 0.0, %v936
  %v938 = vpop.f32.mrf.mxu0
  %v939 = vpop.f32.mrf.mxu0
  %v940 = vadd.f32 0.0, %v939
  %v941 = vpop.f32.mrf.mxu0
  %942 = vmatprep.mubr.bf16.mxu0 %v531
  %943 = vmatmul.mubr.bf16.gmra.mxu0 %v530
  %v944 = vpop.f32.mrf.mxu0
  %v945 = vadd.f32 0.0, %v944
  %v946 = vpop.f32.mrf.mxu0
  %v947 = vpop.f32.mrf.mxu0
  %v948 = vadd.f32 0.0, %v947
  %v949 = vpop.f32.mrf.mxu0
  %950 = vmatprep.mubr.bf16.mxu0 %v535
  %951 = vmatmul.mubr.bf16.gmra.mxu0 %v534
  %v952 = vpop.f32.mrf.mxu0
  %v953 = vadd.f32 0.0, %v952
  %v954 = vpop.f32.mrf.mxu0
  %v955 = vpop.f32.mrf.mxu0
  %v956 = vadd.f32 0.0, %v955
  %v957 = vpop.f32.mrf.mxu0
  %958 = vmatprep.mubr.bf16.mxu0 %v539
  %959 = vmatmul.mubr.bf16.gmra.mxu0 %v538
  %v960 = vpop.f32.mrf.mxu0
  %v961 = vadd.f32 0.0, %v960
  %v962 = vpop.f32.mrf.mxu0
  %v963 = vpop.f32.mrf.mxu0
  %v964 = vadd.f32 0.0, %v963
  %v965 = vpop.f32.mrf.mxu0
  %966 = vmatprep.mubr.bf16.mxu0 %v543
  %967 = vmatmul.mubr.bf16.gmra.mxu0 %v542
  %v968 = vpop.f32.mrf.mxu0
  %v969 = vadd.f32 0.0, %v968
  %v970 = vpop.f32.mrf.mxu0
  %v971 = vpop.f32.mrf.mxu0
  %v972 = vadd.f32 0.0, %v971
  %v973 = vpop.f32.mrf.mxu0
  %974 = vmatprep.mubr.bf16.mxu0 %v547
  %975 = vmatmul.mubr.bf16.gmra.mxu0 %v546
  %v976 = vpop.f32.mrf.mxu0
  %v977 = vadd.f32 0.0, %v976
  %v978 = vpop.f32.mrf.mxu0
  %v979 = vpop.f32.mrf.mxu0
  %v980 = vadd.f32 0.0, %v979
  %v981 = vpop.f32.mrf.mxu0
  %982 = vmatprep.mubr.bf16.mxu0 %v551
  %983 = vmatmul.mubr.bf16.gmra.mxu0 %v550
  %v984 = vpop.f32.mrf.mxu0
  %v985 = vadd.f32 0.0, %v984
  %v986 = vpop.f32.mrf.mxu0
  %v987 = vpop.f32.mrf.mxu0
  %v988 = vadd.f32 0.0, %v987
  %v989 = vpop.f32.mrf.mxu0
  %990 = vmatprep.mubr.bf16.mxu0 %v555
  %991 = vmatmul.mubr.bf16.gmra.mxu0 %v554
  %v992 = vpop.f32.mrf.mxu0
  %v993 = vadd.f32 0.0, %v992
  %v994 = vpop.f32.mrf.mxu0
  %v995 = vpop.f32.mrf.mxu0
  %v996 = vadd.f32 0.0, %v995
  %v997 = vpop.f32.mrf.mxu0
  %998 = vmatprep.mubr.bf16.mxu0 %v559
  %999 = vmatmul.mubr.bf16.gmra.mxu0 %v558
  %v1000 = vpop.f32.mrf.mxu0
  %v1001 = vadd.f32 0.0, %v1000
  %v1002 = vpop.f32.mrf.mxu0
  %v1003 = vpop.f32.mrf.mxu0
  %v1004 = vadd.f32 0.0, %v1003
  %v1005 = vpop.f32.mrf.mxu0
  %1006 = vmatprep.mubr.bf16.mxu0 %v563
  %1007 = vmatmul.mubr.bf16.gmra.mxu0 %v562
  %v1008 = vpop.f32.mrf.mxu0
  %v1009 = vadd.f32 0.0, %v1008
  %v1010 = vpop.f32.mrf.mxu0
  %v1011 = vpop.f32.mrf.mxu0
  %v1012 = vadd.f32 0.0, %v1011
  %v1013 = vpop.f32.mrf.mxu0
  %1014 = vdwg.mxu0
  %1015 = vmatprep.subr.bf16.mxu0 0
  %1016 = vmatpush1.bf16.msra.mxu0 %v813
  %1017 = vmatprep.subr.bf16.mxu0 0
  %1018 = vmatpush1.bf16.msra.mxu0 %v812
  %1019 = vmatprep.subr.bf16.mxu0 0
  %1020 = vmatpush1.bf16.msra.mxu0 %v811
  %1021 = vmatprep.subr.bf16.mxu0 0
  %1022 = vmatpush1.bf16.msra.mxu0 %v810
  %1023 = vmatprep.subr.bf16.mxu0 0
  %1024 = vmatpush1.bf16.msra.mxu0 %v809
  %1025 = vmatprep.subr.bf16.mxu0 0
  %1026 = vmatpush1.bf16.msra.mxu0 %v808
  %1027 = vmatprep.subr.bf16.mxu0 0
  %1028 = vmatpush1.bf16.msra.mxu0 %v807
  %1029 = vmatprep.subr.bf16.mxu0 0
  %1030 = vmatpush1.bf16.msra.mxu0 %v806
  %1031 = vmatprep.subr.bf16.mxu0 0
  %1032 = vmatpush2.bf16.msra.mxu0 %v821
  %1033 = vmatprep.subr.bf16.mxu0 0
  %1034 = vmatpush2.bf16.msra.mxu0 %v820
  %1035 = vmatprep.subr.bf16.mxu0 0
  %1036 = vmatpush2.bf16.msra.mxu0 %v819
  %1037 = vmatprep.subr.bf16.mxu0 0
  %1038 = vmatpush2.bf16.msra.mxu0 %v818
  %1039 = vmatprep.subr.bf16.mxu0 0
  %1040 = vmatpush2.bf16.msra.mxu0 %v817
  %1041 = vmatprep.subr.bf16.mxu0 0
  %1042 = vmatpush2.bf16.msra.mxu0 %v816
  %1043 = vmatprep.subr.bf16.mxu0 0
  %1044 = vmatpush2.bf16.msra.mxu0 %v815
  %1045 = vmatprep.subr.bf16.mxu0 0
  %1046 = vmatpush2.bf16.msra.mxu0 %v814
  %1047 = vmatprep.mubr.bf16.mxu0 %v505
  %1048 = vmatmul.mubr.bf16.gmra.mxu0 %v504
  %v1049 = vpop.f32.mrf.mxu0
  %v1050 = vadd.f32 %v889, %v1049
  %v1051 = vpop.f32.mrf.mxu0
  %v1052 = vpop.f32.mrf.mxu0
  %v1053 = vadd.f32 %v892, %v1052
  %v1054 = vpop.f32.mrf.mxu0
  %1055 = vmatprep.mubr.bf16.mxu0 %v509
  %1056 = vmatmul.mubr.bf16.gmra.mxu0 %v508
  %v1057 = vpop.f32.mrf.mxu0
  %v1058 = vadd.f32 %v897, %v1057
  %v1059 = vpop.f32.mrf.mxu0
  %v1060 = vpop.f32.mrf.mxu0
  %v1061 = vadd.f32 %v900, %v1060
  %v1062 = vpop.f32.mrf.mxu0
  %1063 = vmatprep.mubr.bf16.mxu0 %v513
  %1064 = vmatmul.mubr.bf16.gmra.mxu0 %v512
  %v1065 = vpop.f32.mrf.mxu0
  %v1066 = vadd.f32 %v905, %v1065
  %v1067 = vpop.f32.mrf.mxu0
  %v1068 = vpop.f32.mrf.mxu0
  %v1069 = vadd.f32 %v908, %v1068
  %v1070 = vpop.f32.mrf.mxu0
  %1071 = vmatprep.mubr.bf16.mxu0 %v517
  %1072 = vmatmul.mubr.bf16.gmra.mxu0 %v516
  %v1073 = vpop.f32.mrf.mxu0
  %v1074 = vadd.f32 %v913, %v1073
  %v1075 = vpop.f32.mrf.mxu0
  %v1076 = vpop.f32.mrf.mxu0
  %v1077 = vadd.f32 %v916, %v1076
  %v1078 = vpop.f32.mrf.mxu0
  %1079 = vmatprep.mubr.bf16.mxu0 %v521
  %1080 = vmatmul.mubr.bf16.gmra.mxu0 %v520
  %v1081 = vpop.f32.mrf.mxu0
  %v1082 = vadd.f32 %v921, %v1081
  %v1083 = vpop.f32.mrf.mxu0
  %v1084 = vpop.f32.mrf.mxu0
  %v1085 = vadd.f32 %v924, %v1084
  %v1086 = vpop.f32.mrf.mxu0
  %1087 = vmatprep.mubr.bf16.mxu0 %v525
  %1088 = vmatmul.mubr.bf16.gmra.mxu0 %v524
  %v1089 = vpop.f32.mrf.mxu0
  %v1090 = vadd.f32 %v929, %v1089
  %v1091 = vpop.f32.mrf.mxu0
  %v1092 = vpop.f32.mrf.mxu0
  %v1093 = vadd.f32 %v932, %v1092
  %v1094 = vpop.f32.mrf.mxu0
  %1095 = vmatprep.mubr.bf16.mxu0 %v529
  %1096 = vmatmul.mubr.bf16.gmra.mxu0 %v528
  %v1097 = vpop.f32.mrf.mxu0
  %v1098 = vadd.f32 %v937, %v1097
  %v1099 = vpop.f32.mrf.mxu0
  %v1100 = vpop.f32.mrf.mxu0
  %v1101 = vadd.f32 %v940, %v1100
  %v1102 = vpop.f32.mrf.mxu0
  %1103 = vmatprep.mubr.bf16.mxu0 %v533
  %1104 = vmatmul.mubr.bf16.gmra.mxu0 %v532
  %v1105 = vpop.f32.mrf.mxu0
  %v1106 = vadd.f32 %v945, %v1105
  %v1107 = vpop.f32.mrf.mxu0
  %v1108 = vpop.f32.mrf.mxu0
  %v1109 = vadd.f32 %v948, %v1108
  %v1110 = vpop.f32.mrf.mxu0
  %1111 = vmatprep.mubr.bf16.mxu0 %v537
  %1112 = vmatmul.mubr.bf16.gmra.mxu0 %v536
  %v1113 = vpop.f32.mrf.mxu0
  %v1114 = vadd.f32 %v953, %v1113
  %v1115 = vpop.f32.mrf.mxu0
  %v1116 = vpop.f32.mrf.mxu0
  %v1117 = vadd.f32 %v956, %v1116
  %v1118 = vpop.f32.mrf.mxu0
  %1119 = vmatprep.mubr.bf16.mxu0 %v541
  %1120 = vmatmul.mubr.bf16.gmra.mxu0 %v540
  %v1121 = vpop.f32.mrf.mxu0
  %v1122 = vadd.f32 %v961, %v1121
  %v1123 = vpop.f32.mrf.mxu0
  %v1124 = vpop.f32.mrf.mxu0
  %v1125 = vadd.f32 %v964, %v1124
  %v1126 = vpop.f32.mrf.mxu0
  %1127 = vmatprep.mubr.bf16.mxu0 %v545
  %1128 = vmatmul.mubr.bf16.gmra.mxu0 %v544
  %v1129 = vpop.f32.mrf.mxu0
  %v1130 = vadd.f32 %v969, %v1129
  %v1131 = vpop.f32.mrf.mxu0
  %v1132 = vpop.f32.mrf.mxu0
  %v1133 = vadd.f32 %v972, %v1132
  %v1134 = vpop.f32.mrf.mxu0
  %1135 = vmatprep.mubr.bf16.mxu0 %v549
  %1136 = vmatmul.mubr.bf16.gmra.mxu0 %v548
  %v1137 = vpop.f32.mrf.mxu0
  %v1138 = vadd.f32 %v977, %v1137
  %v1139 = vpop.f32.mrf.mxu0
  %v1140 = vpop.f32.mrf.mxu0
  %v1141 = vadd.f32 %v980, %v1140
  %v1142 = vpop.f32.mrf.mxu0
  %1143 = vmatprep.mubr.bf16.mxu0 %v553
  %1144 = vmatmul.mubr.bf16.gmra.mxu0 %v552
  %v1145 = vpop.f32.mrf.mxu0
  %v1146 = vadd.f32 %v985, %v1145
  %v1147 = vpop.f32.mrf.mxu0
  %v1148 = vpop.f32.mrf.mxu0
  %v1149 = vadd.f32 %v988, %v1148
  %v1150 = vpop.f32.mrf.mxu0
  %1151 = vmatprep.mubr.bf16.mxu0 %v557
  %1152 = vmatmul.mubr.bf16.gmra.mxu0 %v556
  %v1153 = vpop.f32.mrf.mxu0
  %v1154 = vadd.f32 %v993, %v1153
  %v1155 = vpop.f32.mrf.mxu0
  %v1156 = vpop.f32.mrf.mxu0
  %v1157 = vadd.f32 %v996, %v1156
  %v1158 = vpop.f32.mrf.mxu0
  %1159 = vmatprep.mubr.bf16.mxu0 %v561
  %1160 = vmatmul.mubr.bf16.gmra.mxu0 %v560
  %v1161 = vpop.f32.mrf.mxu0
  %v1162 = vadd.f32 %v1001, %v1161
  %v1163 = vpop.f32.mrf.mxu0
  %v1164 = vpop.f32.mrf.mxu0
  %v1165 = vadd.f32 %v1004, %v1164
  %v1166 = vpop.f32.mrf.mxu0
  %1167 = vmatprep.mubr.bf16.mxu0 %v565
  %1168 = vmatmul.mubr.bf16.gmra.mxu0 %v564
  %v1169 = vpop.f32.mrf.mxu0
  %v1170 = vadd.f32 %v1009, %v1169
  %v1171 = vpop.f32.mrf.mxu0
  %v1172 = vpop.f32.mrf.mxu0
  %v1173 = vadd.f32 %v1012, %v1172
  %v1174 = vpop.f32.mrf.mxu0
  %1175 = vdwg.mxu0
  %v1176 = vadd.f32 %v566, %v1050
  %v1177 = vadd.f32 %v567, %v1053
  %v1178 = vadd.f32 %v568, %v1058
  %v1179 = vadd.f32 %v569, %v1061
  %v1180 = vadd.f32 %v570, %v1066
  %v1181 = vadd.f32 %v571, %v1069
  %v1182 = vadd.f32 %v572, %v1074
  %v1183 = vadd.f32 %v573, %v1077
  %v1184 = vadd.f32 %v574, %v1082
  %v1185 = vadd.f32 %v575, %v1085
  %v1186 = vadd.f32 %v576, %v1090
  %v1187 = vadd.f32 %v577, %v1093
  %v1188 = vadd.f32 %v578, %v1098
  %v1189 = vadd.f32 %v579, %v1101
  %v1190 = vadd.f32 %v580, %v1106
  %v1191 = vadd.f32 %v581, %v1109
  %v1192 = vadd.f32 %v582, %v1114
  %v1193 = vadd.f32 %v583, %v1117
  %v1194 = vadd.f32 %v584, %v1122
  %v1195 = vadd.f32 %v585, %v1125
  %v1196 = vadd.f32 %v586, %v1130
  %v1197 = vadd.f32 %v587, %v1133
  %v1198 = vadd.f32 %v588, %v1138
  %v1199 = vadd.f32 %v589, %v1141
  %v1200 = vadd.f32 %v590, %v1146
  %v1201 = vadd.f32 %v591, %v1149
  %v1202 = vadd.f32 %v592, %v1154
  %v1203 = vadd.f32 %v593, %v1157
  %v1204 = vadd.f32 %v594, %v1162
  %v1205 = vadd.f32 %v595, %v1165
  %v1206 = vadd.f32 %v596, %v1170
  %v1207 = vadd.f32 %v597, %v1173
  %vm1208 = vcmask 261120
  %1209 = vst.msk [vmem:[%s26] sm:$0xff] %vm1208, %v1176
  %1210 = vst.msk [vmem:[%s26 + $0x8] sm:$0xff] %vm1208, %v1177
  %1211 = vst.msk [vmem:[%s26 + $0x10] sm:$0xff] %vm1208, %v1178
  %1212 = vst.msk [vmem:[%s26 + $0x18] sm:$0xff] %vm1208, %v1179
  %1213 = vst.msk [vmem:[%s26 + $0x20] sm:$0xff] %vm1208, %v1180
  %1214 = vst.msk [vmem:[%s26 + $0x28] sm:$0xff] %vm1208, %v1181
  %1215 = vst.msk [vmem:[%s26 + $0x30] sm:$0xff] %vm1208, %v1182
  %1216 = vst.msk [vmem:[%s26 + $0x38] sm:$0xff] %vm1208, %v1183
  %1217 = vst.msk [vmem:[%s26 + $0x40] sm:$0xff] %vm1208, %v1184
  %1218 = vst.msk [vmem:[%s26 + $0x48] sm:$0xff] %vm1208, %v1185
  %1219 = vst.msk [vmem:[%s26 + $0x50] sm:$0xff] %vm1208, %v1186
  %1220 = vst.msk [vmem:[%s26 + $0x58] sm:$0xff] %vm1208, %v1187
  %1221 = vst.msk [vmem:[%s26 + $0x60] sm:$0xff] %vm1208, %v1188
  %1222 = vst.msk [vmem:[%s26 + $0x68] sm:$0xff] %vm1208, %v1189
  %1223 = vst.msk [vmem:[%s26 + $0x70] sm:$0xff] %vm1208, %v1190
  %1224 = vst.msk [vmem:[%s26 + $0x78] sm:$0xff] %vm1208, %v1191
  %1225 = vst.msk [vmem:[%s26 + $0x80] sm:$0xff] %vm1208, %v1192
  %1226 = vst.msk [vmem:[%s26 + $0x88] sm:$0xff] %vm1208, %v1193
  %1227 = vst.msk [vmem:[%s26 + $0x90] sm:$0xff] %vm1208, %v1194
  %1228 = vst.msk [vmem:[%s26 + $0x98] sm:$0xff] %vm1208, %v1195
  %1229 = vst.msk [vmem:[%s26 + $0xa0] sm:$0xff] %vm1208, %v1196
  %1230 = vst.msk [vmem:[%s26 + $0xa8] sm:$0xff] %vm1208, %v1197
  %1231 = vst.msk [vmem:[%s26 + $0xb0] sm:$0xff] %vm1208, %v1198
  %1232 = vst.msk [vmem:[%s26 + $0xb8] sm:$0xff] %vm1208, %v1199
  %1233 = vst.msk [vmem:[%s26 + $0xc0] sm:$0xff] %vm1208, %v1200
  %1234 = vst.msk [vmem:[%s26 + $0xc8] sm:$0xff] %vm1208, %v1201
  %1235 = vst.msk [vmem:[%s26 + $0xd0] sm:$0xff] %vm1208, %v1202
  %1236 = vst.msk [vmem:[%s26 + $0xd8] sm:$0xff] %vm1208, %v1203
  %1237 = vst.msk [vmem:[%s26 + $0xe0] sm:$0xff] %vm1208, %v1204
  %1238 = vst.msk [vmem:[%s26 + $0xe8] sm:$0xff] %vm1208, %v1205
  %1239 = vst.msk [vmem:[%s26 + $0xf0] sm:$0xff] %vm1208, %v1206
  %1240 = vst.msk [vmem:[%s26 + $0xf8] sm:$0xff] %vm1208, %v1207
  %s1241 = sld [smem:[#allocation3]]
  %s1242 = smul.u32 32, %s1241
  %p1243 = scmp.lt.s32.totalorder %s1242, 31
  %s1244 = scalar_select %p1243, %s1242, 31
  %s1245 = smul.addr %s1244, 8
  %s1246 = scalar_lea.vmem %s4, %s1245
  // Predicated region
  $region14: #{forward.4} parent=0 // pred_check
    _
  $region15: #{forward.4} parent=0 // pred_check_branch
    %1248 = sbr.rel (0) target = $region17
  $region16: #{forward.4} parent=0 // pred_region
    %s1249 = sld [smem:[#allocation3]]
    %s1250 = smul.u32 32, %s1249
  $region17: #{forward.4} parent=0 // pred_fallthru
    _
  // Predicated region
  $region18: #{forward.4} parent=0 // pred_check
    _
  $region19: #{forward.4} parent=0 // pred_check_branch
    %1252 = sbr.rel (0) target = $region21
  $region20: #{forward.4} parent=0 // pred_region
    %s1253 = sld [smem:[#allocation3]]
    %s1254 = smul.u32 32, %s1253
    %p1255 = scmp.lt.s32.totalorder %s1254, 31
    %s1256 = scalar_select %p1255, %s1254, 31
    %s1257 = smul.addr %s1256, 8
    %s1258 = scalar_lea.vmem %s4, %s1257
  $region21: #{forward.4} parent=0 // pred_fallthru
    _

</llo_original>
